<compile_context>
chip_gen: v7x
topology: tpu7x:2x2x1
jax: 0.10.0
libtpu: 0.0.40
codegen_flags: <defaults>
</compile_context>

<pallas_src>
import functools
import math

import jax
import jax.numpy as jnp
from jax.experimental import pallas as pl
from jax.experimental.pallas import tpu as pltpu


def _round_up(x, m):
    return ((x + m - 1) // m) * m


def _scalar_mix_kernel(K, w_ref, *refs):
    # w_ref : SMEM (K,) f32, gamma * softmax(scalar_parameters)
    # refs  : K input VMEM tiles (tm, tw) followed by the output tile (tm, tw)
    x_refs = refs[:K]
    o_ref = refs[K]
    # f32 accumulation regardless of input/output dtype (matches the reference,
    # where the weights/gamma are float32 parameters).
    acc = w_ref[0] * x_refs[0][...].astype(jnp.float32)
    for k in range(1, K):  # K is small & static -> unrolled VPU FMAs
        acc = acc + w_ref[k] * x_refs[k][...].astype(jnp.float32)
    o_ref[...] = acc.astype(o_ref.dtype)


def _tpu_vmem_info():
    """Returns (vmem_capacity_bytes, assume_two_tensorcores)."""
    cap = 64 * 2**20  # conservative default (v7x-class)
    try:
        cap = int(getattr(pltpu.get_tpu_info(), "vmem_capacity_bytes", cap))
    except Exception:
        pass
    # v5e / v6e expose 128 MiB per (single) TensorCore; v7x exposes 64 MiB and
    # has 2 TensorCores per chip that a "parallel" grid axis can shard over.
    multi_core = cap < 100 * 2**20
    return cap, multi_core


def scalar_mix(
    tensors,
    scalar_parameters,
    gamma,
    *,
    out_dtype=None,                      # None -> promote(input, f32) like the reference
    target_block_elems=2 * 1024 * 1024,  # per-input block element cap (~8 MiB f32)
):
    """Pallas ScalarMix forward.

    tensors: list of K arrays, all the same shape (at least 1 element)
    scalar_parameters: (K,) float32 raw (pre-softmax) weights
    gamma: (1,) float32 scale
    """
    K = len(tensors)
    assert scalar_parameters.shape == (K,)
    orig_shape = tensors[0].shape
    for t in tensors:
        assert t.shape == orig_shape, "all mixed tensors must share a shape"
    N = math.prod(orig_shape)
    assert N > 0

    # --- tiny glue in plain JAX: softmax over K scalars, gamma folded in ----
    w = gamma.reshape(()).astype(jnp.float32) * jax.nn.softmax(
        scalar_parameters.astype(jnp.float32), axis=0
    )

    if out_dtype is None:
        out_dtype = jnp.promote_types(tensors[0].dtype, jnp.float32)
    out_dtype = jnp.dtype(out_dtype)

    # --- 2-D view (always a free, contiguous reshape; never a pad/copy) -----
    # Lane-dense slab when N is a 128-multiple, otherwise collapse the leading
    # dims and keep the natural last dim (block may equal the full dim, or the
    # ragged tail is masked by Pallas for this purely elementwise op).
    if N % 128 == 0:
        cols = next(c for c in (4096, 2048, 1024, 512, 256, 128) if N % c == 0)
    else:
        cols = orig_shape[-1] if len(orig_shape) > 1 else N
    rows = N // cols
    xs = [t.reshape(rows, cols) for t in tensors]

    # --- column tile ---------------------------------------------------------
    MAX_TW = 4096
    if cols <= MAX_TW:
        tw = cols           # equal to the full dim -> always legal
    else:
        tw = MAX_TW         # multiple of 128 -> legal; ragged last col block masked

    # --- row tile from chip-aware VMEM budget + element cap -------------------
    in_itemsize = sum(jnp.dtype(x.dtype).itemsize for x in xs)
    min_item = min([jnp.dtype(x.dtype).itemsize for x in xs] + [out_dtype.itemsize])
    sub = max(8, 32 // min_item)  # sublane multiple so packed dtypes stay dense

    vmem_cap, multi_core = _tpu_vmem_info()
    if vmem_cap >= 100 * 2**20:          # v5e / v6e: 128 MiB VMEM, single TC
        budget = 96 * 2**20
        vmem_limit = 110 * 2**20
    else:                                # v7x-class: 64 MiB VMEM per TC, 2 TCs
        budget = 40 * 2**20
        vmem_limit = 48 * 2**20

    # bytes one row costs across all double-buffered input + output tiles
    row_bytes = 2 * tw * (in_itemsize + out_dtype.itemsize)
    tm = max(sub, (budget // row_bytes) // sub * sub)
    tm = min(tm, max(sub, (target_block_elems // tw) // sub * sub))

    if multi_core and rows > sub:
        # 2 TensorCores: ensure the parallel row axis has an even number of
        # steps (>= 2) so both cores get work; don't shrink tiles beyond that.
        steps = max(2, pl.cdiv(rows, tm))
        steps += steps % 2
        tm = min(tm, _round_up(pl.cdiv(rows, steps), sub))

    tm = max(1, min(tm, rows))  # tm == rows (full dim) is legal for tiny inputs

    grid = (pl.cdiv(rows, tm), pl.cdiv(cols, tw))

    kernel = functools.partial(_scalar_mix_kernel, K)
    out2d = pl.pallas_call(
        kernel,
        out_shape=jax.ShapeDtypeStruct((rows, cols), out_dtype),
        grid_spec=pltpu.PrefetchScalarGridSpec(
            num_scalar_prefetch=1,  # gamma-folded softmax weights -> SMEM
            grid=grid,
            in_specs=[pl.BlockSpec((tm, tw), lambda i, j, w_: (i, j))
                      for _ in range(K)],
            out_specs=pl.BlockSpec((tm, tw), lambda i, j, w_: (i, j)),
        ),
        compiler_params=pltpu.CompilerParams(
            dimension_semantics=("parallel", "parallel"),
            vmem_limit_bytes=vmem_limit,
        ),
    )(w, *xs)

    # rows * cols == N exactly -> a plain (free) reshape, no slicing/copy.
    return out2d.reshape(orig_shape)


def scalar_mix_reference(tensors, scalar_parameters, gamma):
    normed = jax.nn.softmax(scalar_parameters.astype(jnp.float32), axis=0)
    acc = sum(normed[k] * tensors[k].astype(jnp.float32)
              for k in range(len(tensors)))
    return gamma[0] * acc


if __name__ == "__main__":
    key = jax.random.PRNGKey(0)

    # Deterministic parameters. The module's __init__ uses zeros / gamma=1.0;
    # distinct values make the softmax mix non-trivial.
    scalar_parameters = jnp.array([0.1, -0.2, 0.3, 0.05], dtype=jnp.float32)
    gamma = jnp.array([1.3], dtype=jnp.float32)
    K = scalar_parameters.shape[0]

    # Case 1: [2, 8, 32]  -> N=512, lane-dense path (W=512).
    # Case 2: [3, 5, 60]  -> N=900, ragged path (no padding, (15, 60) blocks).
    # Case 3: [2, 8, 128] bf16 inputs with dtype-preserving bf16 output.
    cases = [
        ((2, 8, 32), jnp.float32, None, 1e-5, 1e-5),
        ((3, 5, 60), jnp.float32, None, 1e-5, 1e-5),
        ((2, 8, 128), jnp.bfloat16, jnp.bfloat16, 5e-2, 2e-2),
    ]

    for shape, in_dtype, od, atol, rtol in cases:
        keys = jax.random.split(jax.random.fold_in(key, shape[-1]), K)
        tensors = [
            jax.random.normal(keys[k], shape, dtype=jnp.float32).astype(in_dtype)
            for k in range(K)
        ]

        out = scalar_mix(tensors, scalar_parameters, gamma, out_dtype=od)
        out = jax.block_until_ready(out)

        ref = scalar_mix_reference(tensors, scalar_parameters, gamma)
        expected_dtype = od if od is not None else jnp.promote_types(in_dtype, jnp.float32)
        assert out.shape == shape, f"shape mismatch for {shape}"
        assert out.dtype == jnp.dtype(expected_dtype), f"dtype mismatch for {shape}"
        assert jnp.allclose(out.astype(jnp.float32), ref, atol=atol, rtol=rtol), \
            f"value mismatch for {shape}"

    print("KERNEL_OK")
</pallas_src>

<mosaic_0001>
module attributes {stable_mosaic.version = 11 : i64} {
  func.func @_scalar_mix_kernel(%arg0: i32, %arg1: i32, %arg2: memref<4xf32, #tpu.memory_space<smem>>, %arg3: memref<1x512xf32, #tpu.memory_space<vmem>>, %arg4: memref<1x512xf32, #tpu.memory_space<vmem>>, %arg5: memref<1x512xf32, #tpu.memory_space<vmem>>, %arg6: memref<1x512xf32, #tpu.memory_space<vmem>>, %arg7: memref<1x512xf32, #tpu.memory_space<vmem>>) attributes {dimension_semantics = [#tpu.dimension_semantics<parallel>, #tpu.dimension_semantics<parallel>], iteration_bounds = array<i64: 1, 1>, scalar_prefetch = 1 : i64, scratch_operands = 0 : i64, tpu.core_type = #tpu.core_type<tc>, window_params = [{transform_indices = @transform_0, window_bounds = array<i64: 1, 512>}, {transform_indices = @transform_1, window_bounds = array<i64: 1, 512>}, {transform_indices = @transform_2, window_bounds = array<i64: 1, 512>}, {transform_indices = @transform_3, window_bounds = array<i64: 1, 512>}, {transform_indices = @transform_4, window_bounds = array<i64: 1, 512>}]} {
    %c0 = arith.constant 0 : index
    %0 = memref.load %arg2[%c0] : memref<4xf32, #tpu.memory_space<smem>>
    %c0_0 = arith.constant 0 : index
    %c0_1 = arith.constant 0 : index
    %1 = vector.load %arg3[%c0_0, %c0_1] : memref<1x512xf32, #tpu.memory_space<vmem>>, vector<1x512xf32>
    %2 = vector.broadcast %0 : f32 to vector<1x512xf32>
    %3 = arith.mulf %2, %1 : vector<1x512xf32>
    %c1 = arith.constant 1 : index
    %4 = memref.load %arg2[%c1] : memref<4xf32, #tpu.memory_space<smem>>
    %c0_2 = arith.constant 0 : index
    %c0_3 = arith.constant 0 : index
    %5 = vector.load %arg4[%c0_2, %c0_3] : memref<1x512xf32, #tpu.memory_space<vmem>>, vector<1x512xf32>
    %6 = vector.broadcast %4 : f32 to vector<1x512xf32>
    %7 = arith.mulf %6, %5 : vector<1x512xf32>
    %8 = arith.addf %3, %7 : vector<1x512xf32>
    %c2 = arith.constant 2 : index
    %9 = memref.load %arg2[%c2] : memref<4xf32, #tpu.memory_space<smem>>
    %c0_4 = arith.constant 0 : index
    %c0_5 = arith.constant 0 : index
    %10 = vector.load %arg5[%c0_4, %c0_5] : memref<1x512xf32, #tpu.memory_space<vmem>>, vector<1x512xf32>
    %11 = vector.broadcast %9 : f32 to vector<1x512xf32>
    %12 = arith.mulf %11, %10 : vector<1x512xf32>
    %13 = arith.addf %8, %12 : vector<1x512xf32>
    %c3 = arith.constant 3 : index
    %14 = memref.load %arg2[%c3] : memref<4xf32, #tpu.memory_space<smem>>
    %c0_6 = arith.constant 0 : index
    %c0_7 = arith.constant 0 : index
    %15 = vector.load %arg6[%c0_6, %c0_7] : memref<1x512xf32, #tpu.memory_space<vmem>>, vector<1x512xf32>
    %16 = vector.broadcast %14 : f32 to vector<1x512xf32>
    %17 = arith.mulf %16, %15 : vector<1x512xf32>
    %18 = arith.addf %13, %17 : vector<1x512xf32>
    %c0_8 = arith.constant 0 : index
    %c0_9 = arith.constant 0 : index
    %19 = vector.load %arg7[%c0_8, %c0_9] : memref<1x512xf32, #tpu.memory_space<vmem>>, vector<1x512xf32>
    tpu.vector_store %arg7[%c0_8, %c0_9], %18 {strides = array<i32>} : memref<1x512xf32, #tpu.memory_space<vmem>>, vector<1x512xf32>,
    return
  }
  func.func @transform_0(%arg0: i32, %arg1: i32, %arg2: memref<4xf32, #tpu.memory_space<smem>>) -> (i32, i32) {
    %c0_i32 = arith.constant 0 : i32
    return %arg0, %arg1 : i32, i32
  }
  func.func @transform_1(%arg0: i32, %arg1: i32, %arg2: memref<4xf32, #tpu.memory_space<smem>>) -> (i32, i32) {
    %c0_i32 = arith.constant 0 : i32
    return %arg0, %arg1 : i32, i32
  }
  func.func @transform_2(%arg0: i32, %arg1: i32, %arg2: memref<4xf32, #tpu.memory_space<smem>>) -> (i32, i32) {
    %c0_i32 = arith.constant 0 : i32
    return %arg0, %arg1 : i32, i32
  }
  func.func @transform_3(%arg0: i32, %arg1: i32, %arg2: memref<4xf32, #tpu.memory_space<smem>>) -> (i32, i32) {
    %c0_i32 = arith.constant 0 : i32
    return %arg0, %arg1 : i32, i32
  }
  func.func @transform_4(%arg0: i32, %arg1: i32, %arg2: memref<4xf32, #tpu.memory_space<smem>>) -> (i32, i32) {
    %c0_i32 = arith.constant 0 : i32
    return %arg0, %arg1 : i32, i32
  }
}

</mosaic_0001>

<llo_original>
// kernel: tpu_custom_call.1
$region0: #{tpu_custom_call.1}
  #allocation0 [shape = 'u32[]', space=smem, size = 0x4, offset = 0x4, fixed_abs, tag = 'smem constant byte address 0x4 - core index']
  #allocation1 [shape = 'u32[144,128]{1,0:T(1,128)}', space=vmem, size = 0x12000, scoped, tag = 'internal scratch']
  #allocation2 [shape = 's32[1]{0}', space=sflag, size = 0x4, scoped, tag = 'scoped memory for tpu_custom_call.1']
  #allocation3 [shape = 'u8[512]{0}', space=smem, size = 0x200, scoped, tag = 'prefetched SMEM operand 0']
  %s0 = inlined_call_operand.hbm [shape: f32[4], index: 0, kind: input, shape index: {}]
  %s1 = inlined_call_operand.hbm [shape: f32[1,512], index: 1, kind: input, shape index: {}]
  %s2 = inlined_call_operand.vmem [shape: f32[1,512], index: 2, kind: input, shape index: {}]
  %s3 = inlined_call_operand.vmem [shape: f32[1,512], index: 3, kind: input, shape index: {}]
  %s4 = inlined_call_operand.vmem [shape: f32[1,512], index: 4, kind: input, shape index: {}]
  %s5 = inlined_call_operand.hbm [shape: f32[1,512], index: 5, kind: output, shape index: {}]
  %s6 = sld [smem:[#allocation0]]
  $region30: #{tpu_custom_call.1} parent=0
    _
  %s8 = ssub.s32 1, %s6
  %s9 = scalar_select 0, %s8, %s6
  %11 = dma.hbm_to_smem %s0, 16, [#allocation3], [#allocation2]
  %12 = dma.done [#allocation2], 16
  %13 = sfence
  $region1: #{tpu_custom_call.1} parent=0
    #allocation4 [shape = 'u8[2048]{0}', space=vmem, size = 0x800, scoped, tag = 'input window, operand 1, single buffered']
    #allocation5 [shape = 's32[1]{0}', space=sflag, size = 0x4, scoped, tag = 'scoped memory for tpu_custom_call.1']
    #allocation6 [shape = 's32[1]{0}', space=sflag, size = 0x4, scoped, tag = 'scoped memory for tpu_custom_call.1']
    #allocation7 [shape = 'u8[2048]{0}', space=vmem, size = 0x800, scoped, tag = 'output window, operand 0, single buffered']
    %14 = vsyncpa [#allocation5], 0
    %15 = vsyncpa [#allocation6], 0
    // Predicated region
    $region2: #{tpu_custom_call.1} parent=1 // pred_check
      _
    $region3: #{tpu_custom_call.1} parent=1 // pred_check_branch
      %17 = sbr.rel (0) target = $region5
    $region4: #{tpu_custom_call.1} parent=1 // pred_region
      %s19 = ssub.s32 64, 64
      %20 = vsyncadd [#allocation5], %s19
      %s22 = sshll.u32 [#allocation4], 4
      %s23 = int_to_ptr.vmem [resolvable:$true] %s22
      %25 = dma.hbm_to_vmem [thread:$0]  %s1, 64, %s23, [#allocation5]
    $region5: #{tpu_custom_call.1} parent=1 // pred_fallthru
      _
    // Predicated region
    $region6: #{tpu_custom_call.1} parent=1 // pred_check
      _
    $region7: #{tpu_custom_call.1} parent=1 // pred_check_branch
      %27 = sbr.rel (0) target = $region9
    $region8: #{tpu_custom_call.1} parent=1 // pred_region
      _
    $region9: #{tpu_custom_call.1} parent=1 // pred_fallthru
      _
    // Predicated region
    $region10: #{tpu_custom_call.1} parent=1 // pred_check
      _
    $region11: #{tpu_custom_call.1} parent=1 // pred_check_branch
      %29 = sbr.rel (0) target = $region13
    $region12: #{tpu_custom_call.1} parent=1 // pred_region
      _
    $region13: #{tpu_custom_call.1} parent=1 // pred_fallthru
      _
    // Predicated region
    $region14: #{tpu_custom_call.1} parent=1 // pred_check
      _
    $region15: #{tpu_custom_call.1} parent=1 // pred_check_branch
      %31 = sbr.rel (0) target = $region17
    $region16: #{tpu_custom_call.1} parent=1 // pred_region
      _
    $region17: #{tpu_custom_call.1} parent=1 // pred_fallthru
      _
    // Predicated region
    $region18: #{tpu_custom_call.1} parent=1 // pred_check
      _
    $region19: #{tpu_custom_call.1} parent=1 // pred_check_branch
      %33 = sbr.rel (0) target = $region21
    $region20: #{tpu_custom_call.1} parent=1 // pred_region
      %34 = dma.done [#allocation5], 64
    $region21: #{tpu_custom_call.1} parent=1 // pred_fallthru
      _
    %s35 = sld [smem:[#allocation3]]
    %v36 = vld [vmem:[#allocation4] sm:$0xf]
    %v37 = vstv %s35
    %v38 = vmul.f32 %v37, %v36
    %s39 = sld [smem:[#allocation3 + $0x1]]
    %v40 = vld [vmem:[%s2] sm:$0xf]
    %v41 = vstv %s39
    %v42 = vmul.f32 %v41, %v40
    %v43 = vadd.f32 %v38, %v42
    %s44 = sld [smem:[#allocation3 + $0x2]]
    %v45 = vld [vmem:[%s3] sm:$0xf]
    %v46 = vstv %s44
    %v47 = vmul.f32 %v46, %v45
    %v48 = vadd.f32 %v43, %v47
    %s49 = sld [smem:[#allocation3 + $0x3]]
    %v50 = vld [vmem:[%s4] sm:$0xf]
    %v51 = vstv %s49
    %v52 = vmul.f32 %v51, %v50
    %v53 = vadd.f32 %v48, %v52
    %v54 = vlaneseq
    %vm55 = vcmp.ge.s32.totalorder %v54, 0
    %vm56 = vcmp.lt.s32.totalorder %v54, 512
    %vm57 = vmand %vm55, %vm56
    %58 = vst.msk [vmem:[#allocation7] sm:$0xf] %vm57, %v53
    // Predicated region
    $region22: #{tpu_custom_call.1} parent=1 // pred_check
      _
    $region23: #{tpu_custom_call.1} parent=1 // pred_check_branch
      %60 = sbr.rel (0) target = $region25
    $region24: #{tpu_custom_call.1} parent=1 // pred_region
      %s62 = ssub.s32 64, 64
      %63 = vsyncadd [#allocation6], %s62
      %s65 = sshll.u32 [#allocation7], 4
      %s66 = int_to_ptr.vmem [resolvable:$true] %s65
      %68 = dma.vmem_to_hbm [thread:$0]  %s66, 64, %s5, [#allocation6]
    $region25: #{tpu_custom_call.1} parent=1 // pred_fallthru
      _
    // Predicated region
    $region26: #{tpu_custom_call.1} parent=1 // pred_check
      _
    $region27: #{tpu_custom_call.1} parent=1 // pred_check_branch
      %70 = sbr.rel (0) target = $region29
    $region28: #{tpu_custom_call.1} parent=1 // pred_region
      %71 = dma.done [#allocation6], 64
    $region29: #{tpu_custom_call.1} parent=1 // pred_fallthru
      _
    %72 = vsyncpa [#allocation5], 1
    %73 = vsyncpa [#allocation6], 1

</llo_original>
